<compile_context>
chip_gen: v7x
topology: tpu7x:2x2x1
jax: 0.10.0
libtpu: 0.0.40
codegen_flags: <defaults>
</compile_context>

<pallas_src>
import jax
import jax.numpy as jnp
from jax.experimental import pallas as pl
from jax.experimental.pallas import tpu as pltpu


def dcrnn_cell_kernel(xh_ref, a_ref, w0_ref, b0_ref, bc_ref,
                      wih_ref, bih_ref, scale_ref, shift_ref, out_ref):
    """Single invocation over the whole sequence.

    xh_ref : (T*N, H+F)   [h || x] — hidden state tiled over time, concatenated
                          (wrapper-side) with the time-flattened node features
    a_ref  : (T*N, T*N)   block-diagonal kron(I_T, A_hat)
    w0_ref : (H+F, 5H)    blockdiag(Whh^T, [W1||W2])
    b0_ref : (1, 5H)      [b_hh || 0]
    bc_ref : (1, 2H)      [b1 || b2]  (GCNConv biases, added after propagation)
    wih_ref: (H, 3H)      GRU input-projection weight (pre-transposed)
    out    : (T*N, H)     BatchNorm'd GRU outputs for every t
    """
    H = out_ref.shape[1]

    xh = xh_ref[...]
    h = xh[:, :H]                                   # tiled (loop-invariant) hidden state

    # --- fused loop-invariant projections: [gh || xw] in one MXU pass ---
    m0 = jnp.dot(xh, w0_ref[...], preferred_element_type=jnp.float32) + b0_ref[...]
    gh = m0[:, :3 * H]                              # h @ Whh^T + b_hh
    xw = m0[:, 3 * H:]                              # x @ [W1 || W2]

    # --- DiffusionGraphConv propagation: both convs in one matmul ---
    c = jnp.dot(a_ref[...], xw, preferred_element_type=jnp.float32) + bc_ref[...]
    g = jnp.maximum(c[:, :H], 0.0) + c[:, H:]       # relu(conv1) (+dropout=id) + conv2

    # --- GRUCell (PyTorch gate order r, z, n) ---
    gi = jnp.dot(g, wih_ref[...], preferred_element_type=jnp.float32) + bih_ref[...]
    r = jax.nn.sigmoid(gi[:, 0 * H:1 * H] + gh[:, 0 * H:1 * H])
    z = jax.nn.sigmoid(gi[:, 1 * H:2 * H] + gh[:, 1 * H:2 * H])
    n = jnp.tanh(gi[:, 2 * H:3 * H] + r * gh[:, 2 * H:3 * H])
    h_t = (1.0 - z) * n + z * h

    # --- BatchNorm1d folded to affine scale/shift (eval mode); dropout == identity ---
    out_ref[...] = h_t * scale_ref[...] + shift_ref[...]


def dcrnn_cell_forward(x, h, a_hat, params):
    T, N, F = x.shape
    H = h.shape[1]
    (w1, b1, w2, b2, wih_t, bih, whh_t, bhh, gamma, beta, rm, rv) = params

    # ---- one-time wrapper-side layout / parameter fusion (pure glue) ----
    x_flat = x.reshape(T * N, F)
    h_flat = jnp.tile(h, (T, 1))                               # row t*N+n == h[n]
    xh = jnp.concatenate([h_flat, x_flat], axis=1)             # (T*N, H+F)
    a_blk = jnp.kron(jnp.eye(T, dtype=a_hat.dtype), a_hat)     # (T*N, T*N) block-diag

    wc = jnp.concatenate([w1, w2], axis=1)                     # (F, 2H)
    bc = jnp.concatenate([b1, b2], axis=1)                     # (1, 2H)
    # blockdiag(Whh^T, Wc):  [h || x] @ w0 == [h @ Whh^T || x @ Wc]
    w0 = jnp.zeros((H + F, 5 * H), jnp.float32)
    w0 = w0.at[:H, :3 * H].set(whh_t)
    w0 = w0.at[H:, 3 * H:].set(wc)
    b0 = jnp.concatenate([bhh, jnp.zeros((1, 2 * H), jnp.float32)], axis=1)

    scale = gamma * jax.lax.rsqrt(rv + 1e-5)                   # BN running-stat fold
    shift = beta - rm * scale

    operands = (xh, a_blk, w0, b0, bc, wih_t, bih, scale, shift)
    in_specs = [pl.BlockSpec(memory_space=pltpu.MemorySpace.VMEM)
                for _ in operands]

    out_flat = pl.pallas_call(
        dcrnn_cell_kernel,
        out_shape=jax.ShapeDtypeStruct((T * N, H), jnp.float32),
        in_specs=in_specs,
        out_specs=pl.BlockSpec(memory_space=pltpu.MemorySpace.VMEM),
    )(*operands)

    return out_flat.reshape(T, N, H)


def gcn_norm_dense(edge_index, num_nodes):
    """Dense D^{-1/2}(A + I)D^{-1/2} matching PyG GCNConv(add_self_loops=True)."""
    src, dst = edge_index
    A = jnp.zeros((num_nodes, num_nodes), jnp.float32)
    A = A.at[dst, src].set(1.0)                 # aggregate source -> target
    A = A + jnp.eye(num_nodes, dtype=jnp.float32)
    deg = jnp.maximum(A.sum(axis=1), 1.0)       # guard (self-loops make deg >= 1)
    d_inv_sqrt = 1.0 / jnp.sqrt(deg)
    return A * d_inv_sqrt[:, None] * d_inv_sqrt[None, :]


def init_params(key, input_dim, hidden_dim):
    ks = jax.random.split(key, 12)
    s = 0.1
    w1 = s * jax.random.normal(ks[0], (input_dim, hidden_dim), jnp.float32)
    b1 = s * jax.random.normal(ks[1], (1, hidden_dim), jnp.float32)
    w2 = s * jax.random.normal(ks[2], (input_dim, hidden_dim), jnp.float32)
    b2 = s * jax.random.normal(ks[3], (1, hidden_dim), jnp.float32)
    # GRUCell weights stored pre-transposed: (H_in, 3H) so the kernel does g @ W
    wih_t = s * jax.random.normal(ks[4], (hidden_dim, 3 * hidden_dim), jnp.float32)
    bih = s * jax.random.normal(ks[5], (1, 3 * hidden_dim), jnp.float32)
    whh_t = s * jax.random.normal(ks[6], (hidden_dim, 3 * hidden_dim), jnp.float32)
    bhh = s * jax.random.normal(ks[7], (1, 3 * hidden_dim), jnp.float32)
    # BatchNorm1d params + deterministic (non-trivial) running stats
    gamma = 1.0 + s * jax.random.normal(ks[8], (1, hidden_dim), jnp.float32)
    beta = s * jax.random.normal(ks[9], (1, hidden_dim), jnp.float32)
    rm = s * jax.random.normal(ks[10], (1, hidden_dim), jnp.float32)
    rv = 1.0 + 0.1 * jax.nn.softplus(
        jax.random.normal(ks[11], (1, hidden_dim), jnp.float32))
    return (w1, b1, w2, b2, wih_t, bih, whh_t, bhh, gamma, beta, rm, rv)


def reference_forward(x, h, a_hat, params):
    """Pure-JAX reference (unfused, per-timestep) for correctness checking."""
    (w1, b1, w2, b2, wih_t, bih, whh_t, bhh, gamma, beta, rm, rv) = params
    H = h.shape[1]

    def step(x_t):
        c1 = a_hat @ (x_t @ w1) + b1
        c2 = a_hat @ (x_t @ w2) + b2
        g = jnp.maximum(c1, 0.0) + c2
        gi = g @ wih_t + bih
        gh = h @ whh_t + bhh
        r = jax.nn.sigmoid(gi[:, :H] + gh[:, :H])
        z = jax.nn.sigmoid(gi[:, H:2 * H] + gh[:, H:2 * H])
        n = jnp.tanh(gi[:, 2 * H:] + r * gh[:, 2 * H:])
        h_t = (1.0 - z) * n + z * h
        return (h_t - rm) * jax.lax.rsqrt(rv + 1e-5) * gamma + beta

    return jax.vmap(step)(x)


if __name__ == "__main__":
    T, N, F_IN, H = 8, 16, 4, 32   # seq len, num nodes, input_dim, hidden_dim

    key = jax.random.PRNGKey(0)
    k_x, k_h, k_p = jax.random.split(key, 3)

    x = jax.random.normal(k_x, (T, N, F_IN), jnp.float32)
    h = jax.random.normal(k_h, (N, H), jnp.float32)

    # Deterministic ring graph (bidirectional edges) over N nodes.
    idx = jnp.arange(N)
    src = jnp.concatenate([idx, (idx + 1) % N])
    dst = jnp.concatenate([(idx + 1) % N, idx])
    edge_index = jnp.stack([src, dst])           # [2, E]
    a_hat = gcn_norm_dense(edge_index, N)

    params = init_params(k_p, F_IN, H)

    out = dcrnn_cell_forward(x, h, a_hat, params)
    out = jax.block_until_ready(out)

    ref = reference_forward(x, h, a_hat, params)
    assert out.shape == (T, N, H)
    assert jnp.allclose(out, ref, atol=1e-4, rtol=1e-4)

    print("KERNEL_OK")
</pallas_src>

<mosaic_0001>
module attributes {stable_mosaic.version = 11 : i64} {
  func.func @dcrnn_cell_kernel(%arg0: memref<128x36xf32, #tpu.memory_space<vmem>>, %arg1: memref<128x128xf32, #tpu.memory_space<vmem>>, %arg2: memref<36x160xf32, #tpu.memory_space<vmem>>, %arg3: memref<1x160xf32, #tpu.memory_space<vmem>>, %arg4: memref<1x64xf32, #tpu.memory_space<vmem>>, %arg5: memref<32x96xf32, #tpu.memory_space<vmem>>, %arg6: memref<1x96xf32, #tpu.memory_space<vmem>>, %arg7: memref<1x32xf32, #tpu.memory_space<vmem>>, %arg8: memref<1x32xf32, #tpu.memory_space<vmem>>, %arg9: memref<128x32xf32, #tpu.memory_space<vmem>>) attributes {dimension_semantics = [], scalar_prefetch = 0 : i64, scratch_operands = 0 : i64, tpu.core_type = #tpu.core_type<tc>} {
    %c0 = arith.constant 0 : index
    %c0_0 = arith.constant 0 : index
    %0 = vector.load %arg0[%c0, %c0_0] : memref<128x36xf32, #tpu.memory_space<vmem>>, vector<128x36xf32>
    %1 = vector.extract_strided_slice %0 {offsets = [0, 0], sizes = [128, 32], strides = [1, 1]} : vector<128x36xf32> to vector<128x32xf32>
    %c0_1 = arith.constant 0 : index
    %c0_2 = arith.constant 0 : index
    %2 = vector.load %arg2[%c0_1, %c0_2] : memref<36x160xf32, #tpu.memory_space<vmem>>, vector<36x160xf32>
    %cst = arith.constant dense<0.000000e+00> : vector<128x160xf32>
    %3 = tpu.matmul %0, %2, %cst {dimension_numbers = #tpu.dot_dimension_numbers<[1], [0], [0], [1], [0, 0, 1, 1], [], []>} : vector<128x36xf32>, vector<36x160xf32>, vector<128x160xf32> -> vector<128x160xf32>
    %c0_3 = arith.constant 0 : index
    %c0_4 = arith.constant 0 : index
    %4 = vector.load %arg3[%c0_3, %c0_4] : memref<1x160xf32, #tpu.memory_space<vmem>>, vector<1x160xf32>
    %5 = vector.broadcast %4 : vector<1x160xf32> to vector<128x160xf32>
    %6 = arith.addf %3, %5 : vector<128x160xf32>
    %7 = vector.extract_strided_slice %6 {offsets = [0, 0], sizes = [128, 96], strides = [1, 1]} : vector<128x160xf32> to vector<128x96xf32>
    %8 = vector.extract_strided_slice %6 {offsets = [0, 96], sizes = [128, 64], strides = [1, 1]} : vector<128x160xf32> to vector<128x64xf32>
    %c0_5 = arith.constant 0 : index
    %c0_6 = arith.constant 0 : index
    %9 = vector.load %arg1[%c0_5, %c0_6] : memref<128x128xf32, #tpu.memory_space<vmem>>, vector<128x128xf32>
    %cst_7 = arith.constant dense<0.000000e+00> : vector<128x64xf32>
    %10 = tpu.matmul %9, %8, %cst_7 {dimension_numbers = #tpu.dot_dimension_numbers<[1], [0], [0], [1], [0, 0, 1, 1], [], []>} : vector<128x128xf32>, vector<128x64xf32>, vector<128x64xf32> -> vector<128x64xf32>
    %c0_8 = arith.constant 0 : index
    %c0_9 = arith.constant 0 : index
    %11 = vector.load %arg4[%c0_8, %c0_9] : memref<1x64xf32, #tpu.memory_space<vmem>>, vector<1x64xf32>
    %12 = vector.broadcast %11 : vector<1x64xf32> to vector<128x64xf32>
    %13 = arith.addf %10, %12 : vector<128x64xf32>
    %14 = vector.extract_strided_slice %13 {offsets = [0, 0], sizes = [128, 32], strides = [1, 1]} : vector<128x64xf32> to vector<128x32xf32>
    %cst_10 = arith.constant 0.000000e+00 : f32
    %15 = vector.broadcast %cst_10 : f32 to vector<128x32xf32>
    %16 = arith.maximumf %14, %15 : vector<128x32xf32>
    %17 = vector.extract_strided_slice %13 {offsets = [0, 32], sizes = [128, 32], strides = [1, 1]} : vector<128x64xf32> to vector<128x32xf32>
    %18 = arith.addf %16, %17 : vector<128x32xf32>
    %c0_11 = arith.constant 0 : index
    %c0_12 = arith.constant 0 : index
    %19 = vector.load %arg5[%c0_11, %c0_12] : memref<32x96xf32, #tpu.memory_space<vmem>>, vector<32x96xf32>
    %cst_13 = arith.constant dense<0.000000e+00> : vector<128x96xf32>
    %20 = tpu.matmul %18, %19, %cst_13 {dimension_numbers = #tpu.dot_dimension_numbers<[1], [0], [0], [1], [0, 0, 1, 1], [], []>} : vector<128x32xf32>, vector<32x96xf32>, vector<128x96xf32> -> vector<128x96xf32>
    %c0_14 = arith.constant 0 : index
    %c0_15 = arith.constant 0 : index
    %21 = vector.load %arg6[%c0_14, %c0_15] : memref<1x96xf32, #tpu.memory_space<vmem>>, vector<1x96xf32>
    %22 = vector.broadcast %21 : vector<1x96xf32> to vector<128x96xf32>
    %23 = arith.addf %20, %22 : vector<128x96xf32>
    %24 = vector.extract_strided_slice %23 {offsets = [0, 0], sizes = [128, 32], strides = [1, 1]} : vector<128x96xf32> to vector<128x32xf32>
    %25 = vector.extract_strided_slice %7 {offsets = [0, 0], sizes = [128, 32], strides = [1, 1]} : vector<128x96xf32> to vector<128x32xf32>
    %26 = arith.addf %24, %25 : vector<128x32xf32>
    %27 = arith.negf %26 : vector<128x32xf32>
    %28 = math.exp %27 : vector<128x32xf32>
    %cst_16 = arith.constant 1.000000e+00 : f32
    %29 = vector.broadcast %cst_16 : f32 to vector<128x32xf32>
    %30 = arith.addf %29, %28 : vector<128x32xf32>
    %31 = arith.divf %29, %30 : vector<128x32xf32>
    %32 = vector.extract_strided_slice %23 {offsets = [0, 32], sizes = [128, 32], strides = [1, 1]} : vector<128x96xf32> to vector<128x32xf32>
    %33 = vector.extract_strided_slice %7 {offsets = [0, 32], sizes = [128, 32], strides = [1, 1]} : vector<128x96xf32> to vector<128x32xf32>
    %34 = arith.addf %32, %33 : vector<128x32xf32>
    %35 = arith.negf %34 : vector<128x32xf32>
    %36 = math.exp %35 : vector<128x32xf32>
    %cst_17 = arith.constant 1.000000e+00 : f32
    %37 = vector.broadcast %cst_17 : f32 to vector<128x32xf32>
    %38 = arith.addf %37, %36 : vector<128x32xf32>
    %39 = arith.divf %37, %38 : vector<128x32xf32>
    %40 = vector.extract_strided_slice %23 {offsets = [0, 64], sizes = [128, 32], strides = [1, 1]} : vector<128x96xf32> to vector<128x32xf32>
    %41 = vector.extract_strided_slice %7 {offsets = [0, 64], sizes = [128, 32], strides = [1, 1]} : vector<128x96xf32> to vector<128x32xf32>
    %42 = arith.mulf %31, %41 : vector<128x32xf32>
    %43 = arith.addf %40, %42 : vector<128x32xf32>
    %44 = math.tanh %43 : vector<128x32xf32>
    %cst_18 = arith.constant 1.000000e+00 : f32
    %45 = vector.broadcast %cst_18 : f32 to vector<128x32xf32>
    %46 = arith.subf %45, %39 : vector<128x32xf32>
    %47 = arith.mulf %46, %44 : vector<128x32xf32>
    %48 = arith.mulf %39, %1 : vector<128x32xf32>
    %49 = arith.addf %47, %48 : vector<128x32xf32>
    %c0_19 = arith.constant 0 : index
    %c0_20 = arith.constant 0 : index
    %50 = vector.load %arg7[%c0_19, %c0_20] : memref<1x32xf32, #tpu.memory_space<vmem>>, vector<1x32xf32>
    %51 = vector.broadcast %50 : vector<1x32xf32> to vector<128x32xf32>
    %52 = arith.mulf %49, %51 : vector<128x32xf32>
    %c0_21 = arith.constant 0 : index
    %c0_22 = arith.constant 0 : index
    %53 = vector.load %arg8[%c0_21, %c0_22] : memref<1x32xf32, #tpu.memory_space<vmem>>, vector<1x32xf32>
    %54 = vector.broadcast %53 : vector<1x32xf32> to vector<128x32xf32>
    %55 = arith.addf %52, %54 : vector<128x32xf32>
    %c0_23 = arith.constant 0 : index
    %c0_24 = arith.constant 0 : index
    %56 = vector.load %arg9[%c0_23, %c0_24] : memref<128x32xf32, #tpu.memory_space<vmem>>, vector<128x32xf32>
    tpu.vector_store %arg9[%c0_23, %c0_24], %55 {strides = array<i32>} : memref<128x32xf32, #tpu.memory_space<vmem>>, vector<128x32xf32>,
    return
  }
}

</mosaic_0001>

<llo_original>
// kernel: tpu_custom_call.1
$region0: #{tpu_custom_call.1}
  #allocation0 [shape = 'u32[]', space=smem, size = 0x4, offset = 0x4, fixed_abs, tag = 'smem constant byte address 0x4 - core index']
  #allocation1 [shape = 'u32[144,128]{1,0:T(1,128)}', space=vmem, size = 0x12000, scoped, tag = 'internal scratch']
  %s0 = inlined_call_operand.vmem [shape: f32[128,36], index: 0, kind: input, shape index: {}]
  %s1 = inlined_call_operand.vmem [shape: f32[128,128], index: 1, kind: input, shape index: {}]
  %s2 = inlined_call_operand.hbm [shape: f32[36,160], index: 2, kind: input, shape index: {}]
  %s3 = inlined_call_operand.vmem [shape: f32[1,160], index: 3, kind: input, shape index: {}]
  %s4 = inlined_call_operand.vmem [shape: f32[1,64], index: 4, kind: input, shape index: {}]
  %s5 = inlined_call_operand.vmem [shape: f32[32,96], index: 5, kind: input, shape index: {}]
  %s6 = inlined_call_operand.vmem [shape: f32[1,96], index: 6, kind: input, shape index: {}]
  %s7 = inlined_call_operand.vmem [shape: f32[1,32], index: 7, kind: input, shape index: {}]
  %s8 = inlined_call_operand.vmem [shape: f32[1,32], index: 8, kind: input, shape index: {}]
  %s9 = inlined_call_operand.vmem [shape: f32[128,32], index: 9, kind: output, shape index: {}]
  %s10 = sld [smem:[#allocation0]]
  $region50: #{tpu_custom_call.1} parent=0
    _
  %s12 = ssub.s32 1, %s10
  %s13 = scalar_select 0, %s12, %s10
  $region1: #{tpu_custom_call.1} parent=0
    #allocation2 [shape = 'u8[40960]{0}', space=vmem, size = 0xa000, scoped, tag = 'input window, operand 2, single buffered']
    #allocation3 [shape = 's32[1]{0}', space=sflag, size = 0x4, scoped, tag = 'scoped memory for tpu_custom_call.1']
    %14 = vsyncpa [#allocation3], 0
    // Predicated region
    $region2: #{tpu_custom_call.1} parent=1 // pred_check
      _
    $region3: #{tpu_custom_call.1} parent=1 // pred_check_branch
      %16 = sbr.rel (0) target = $region5
    $region4: #{tpu_custom_call.1} parent=1 // pred_region
      _
    $region5: #{tpu_custom_call.1} parent=1 // pred_fallthru
      _
    // Predicated region
    $region6: #{tpu_custom_call.1} parent=1 // pred_check
      _
    $region7: #{tpu_custom_call.1} parent=1 // pred_check_branch
      %18 = sbr.rel (0) target = $region9
    $region8: #{tpu_custom_call.1} parent=1 // pred_region
      _
    $region9: #{tpu_custom_call.1} parent=1 // pred_fallthru
      _
    // Predicated region
    $region10: #{tpu_custom_call.1} parent=1 // pred_check
      _
    $region11: #{tpu_custom_call.1} parent=1 // pred_check_branch
      %20 = sbr.rel (0) target = $region13
    $region12: #{tpu_custom_call.1} parent=1 // pred_region
      %s22 = ssub.s32 1280, 1280
      %23 = vsyncadd [#allocation3], %s22
      %s24 = sshll.u32 [#allocation2], 4
      %s25 = int_to_ptr.vmem [resolvable:$true] %s24
      %30 = dma.hbm_to_vmem [thread:$0]  %s2, 1280, %s25, [#allocation3], 256, 256, 16
    $region13: #{tpu_custom_call.1} parent=1 // pred_fallthru
      _
    // Predicated region
    $region14: #{tpu_custom_call.1} parent=1 // pred_check
      _
    $region15: #{tpu_custom_call.1} parent=1 // pred_check_branch
      %32 = sbr.rel (0) target = $region17
    $region16: #{tpu_custom_call.1} parent=1 // pred_region
      _
    $region17: #{tpu_custom_call.1} parent=1 // pred_fallthru
      _
    // Predicated region
    $region18: #{tpu_custom_call.1} parent=1 // pred_check
      _
    $region19: #{tpu_custom_call.1} parent=1 // pred_check_branch
      %34 = sbr.rel (0) target = $region21
    $region20: #{tpu_custom_call.1} parent=1 // pred_region
      _
    $region21: #{tpu_custom_call.1} parent=1 // pred_fallthru
      _
    // Predicated region
    $region22: #{tpu_custom_call.1} parent=1 // pred_check
      _
    $region23: #{tpu_custom_call.1} parent=1 // pred_check_branch
      %36 = sbr.rel (0) target = $region25
    $region24: #{tpu_custom_call.1} parent=1 // pred_region
      _
    $region25: #{tpu_custom_call.1} parent=1 // pred_fallthru
      _
    // Predicated region
    $region26: #{tpu_custom_call.1} parent=1 // pred_check
      _
    $region27: #{tpu_custom_call.1} parent=1 // pred_check_branch
      %38 = sbr.rel (0) target = $region29
    $region28: #{tpu_custom_call.1} parent=1 // pred_region
      _
    $region29: #{tpu_custom_call.1} parent=1 // pred_fallthru
      _
    // Predicated region
    $region30: #{tpu_custom_call.1} parent=1 // pred_check
      _
    $region31: #{tpu_custom_call.1} parent=1 // pred_check_branch
      %40 = sbr.rel (0) target = $region33
    $region32: #{tpu_custom_call.1} parent=1 // pred_region
      _
    $region33: #{tpu_custom_call.1} parent=1 // pred_fallthru
      _
    // Predicated region
    $region34: #{tpu_custom_call.1} parent=1 // pred_check
      _
    $region35: #{tpu_custom_call.1} parent=1 // pred_check_branch
      %42 = sbr.rel (0) target = $region37
    $region36: #{tpu_custom_call.1} parent=1 // pred_region
      _
    $region37: #{tpu_custom_call.1} parent=1 // pred_fallthru
      _
    // Predicated region
    $region38: #{tpu_custom_call.1} parent=1 // pred_check
      _
    $region39: #{tpu_custom_call.1} parent=1 // pred_check_branch
      %44 = sbr.rel (0) target = $region41
    $region40: #{tpu_custom_call.1} parent=1 // pred_region
      %45 = dma.done [#allocation3], 1280
    $region41: #{tpu_custom_call.1} parent=1 // pred_fallthru
      _
    %v46 = vld [vmem:[%s0] sm:$0xff]
    %v47 = vld [vmem:[%s0 + $0x8] sm:$0xff]
    %v48 = vld [vmem:[%s0 + $0x10] sm:$0xff]
    %v49 = vld [vmem:[%s0 + $0x18] sm:$0xff]
    %v50 = vld [vmem:[%s0 + $0x20] sm:$0xff]
    %v51 = vld [vmem:[%s0 + $0x28] sm:$0xff]
    %v52 = vld [vmem:[%s0 + $0x30] sm:$0xff]
    %v53 = vld [vmem:[%s0 + $0x38] sm:$0xff]
    %v54 = vld [vmem:[%s0 + $0x40] sm:$0xff]
    %v55 = vld [vmem:[%s0 + $0x48] sm:$0xff]
    %v56 = vld [vmem:[%s0 + $0x50] sm:$0xff]
    %v57 = vld [vmem:[%s0 + $0x58] sm:$0xff]
    %v58 = vld [vmem:[%s0 + $0x60] sm:$0xff]
    %v59 = vld [vmem:[%s0 + $0x68] sm:$0xff]
    %v60 = vld [vmem:[%s0 + $0x70] sm:$0xff]
    %v61 = vld [vmem:[%s0 + $0x78] sm:$0xff]
    %v62 = vld [vmem:[#allocation2] sm:$0xff]
    %v63 = vld [vmem:[#allocation2 + $0x8] sm:$0xff]
    %v64 = vld [vmem:[#allocation2 + $0x10] sm:$0xff]
    %v65 = vld [vmem:[#allocation2 + $0x18] sm:$0xff]
    %v66 = vld [vmem:[#allocation2 + $0x20] sm:$0xff]
    %v67 = vld [vmem:[#allocation2 + $0x28] sm:$0xff]
    %v68 = vld [vmem:[#allocation2 + $0x30] sm:$0xff]
    %v69 = vld [vmem:[#allocation2 + $0x38] sm:$0xff]
    %v70 = vld [vmem:[#allocation2 + $0x40] sm:$0xf]
    %v71 = vld [vmem:[#allocation2 + $0x48] sm:$0xf]
    %v72 = vld [vmem:[%s3] sm:$0x3]
    %v74 = vlaneseq
    %v75 = vshrl.u32 %v74, 7
    %v76 = vsub.s32 0, %v75
    %v77 = vrot.slane %v72, %v76
    %v78 = vlaneseq
    %v79 = vshrl.u32 %v78, 7
    %v80 = vsub.s32 1, %v79
    %v81 = vrot.slane %v72, %v80
    %vm84 = vcmask 293888
    %v86 = vsel %vm84, %v46, 0
    %v89 = vsel %vm84, %v47, 0
    %v92 = vsel %vm84, %v48, 0
    %v95 = vsel %vm84, %v49, 0
    %v98 = vsel %vm84, %v50, 0
    %v101 = vsel %vm84, %v51, 0
    %v104 = vsel %vm84, %v52, 0
    %v107 = vsel %vm84, %v53, 0
    %v110 = vsel %vm84, %v54, 0
    %v113 = vsel %vm84, %v55, 0
    %v116 = vsel %vm84, %v56, 0
    %v119 = vsel %vm84, %v57, 0
    %v122 = vsel %vm84, %v58, 0
    %v125 = vsel %vm84, %v59, 0
    %v128 = vsel %vm84, %v60, 0
    %v131 = vsel %vm84, %v61, 0
    %vm133 = vcmask 1043456
    %v135 = vsel %vm133, %v70, 0
    %v138 = vsel %vm133, %v71, 0
    %140 = vmatprep.subr.mxu0 %v63
    %141 = vmatpush1.msra.mxu0 %v62
    %142 = vmatprep.subr.mxu0 %v65
    %143 = vmatpush1.msra.mxu0 %v64
    %144 = vmatprep.subr.mxu0 %v67
    %145 = vmatpush1.msra.mxu0 %v66
    %146 = vmatprep.subr.mxu0 %v69
    %147 = vmatpush1.msra.mxu0 %v68
    %148 = vmatprep.subr.mxu0 %v138
    %149 = vmatpush1.msra.mxu0 %v135
    %150 = vmatprep.subr.mxu0 0.0
    %151 = vmatpush1.msra.mxu0 0.0
    %152 = vmatprep.subr.mxu0 0.0
    %153 = vmatpush1.msra.mxu0 0.0
    %154 = vmatprep.subr.mxu0 0.0
    %155 = vmatpush1.msra.mxu0 0.0
    %156 = vmatprep.subr.mxu0 0.0
    %157 = vmatpush1.msra.mxu0 0.0
    %158 = vmatprep.subr.mxu0 0.0
    %159 = vmatpush1.msra.mxu0 0.0
    %160 = vmatprep.subr.mxu0 0.0
    %161 = vmatpush1.msra.mxu0 0.0
    %162 = vmatprep.subr.mxu0 0.0
    %163 = vmatpush1.msra.mxu0 0.0
    %164 = vmatprep.subr.mxu0 0.0
    %165 = vmatpush1.msra.mxu0 0.0
    %166 = vmatprep.subr.mxu0 0.0
    %167 = vmatpush1.msra.mxu0 0.0
    %168 = vmatprep.subr.mxu0 0.0
    %169 = vmatpush1.msra.mxu0 0.0
    %170 = vmatprep.subr.mxu0 0.0
    %171 = vmatpush1.msra.mxu0 0.0
    %172 = vmatprep.subr.mxu0 0.0
    %173 = vmatpush1.msra.mxu0 0.0
    %174 = vmatprep.subr.mxu0 0.0
    %175 = vmatpush1.msra.mxu0 0.0
    %176 = vmatprep.subr.mxu0 0.0
    %177 = vmatpush1.msra.mxu0 0.0
    %178 = vmatprep.subr.mxu0 0.0
    %179 = vmatpush1.msra.mxu0 0.0
    %180 = vmatprep.subr.mxu0 0.0
    %181 = vmatpush1.msra.mxu0 0.0
    %182 = vmatprep.subr.mxu0 0.0
    %183 = vmatpush1.msra.mxu0 0.0
    %184 = vmatprep.subr.mxu0 0.0
    %185 = vmatpush1.msra.mxu0 0.0
    %186 = vmatprep.subr.mxu0 0.0
    %187 = vmatpush1.msra.mxu0 0.0
    %188 = vmatprep.subr.mxu0 0.0
    %189 = vmatpush1.msra.mxu0 0.0
    %190 = vmatprep.subr.mxu0 0.0
    %191 = vmatpush1.msra.mxu0 0.0
    %192 = vmatprep.subr.mxu0 0.0
    %193 = vmatpush1.msra.mxu0 0.0
    %194 = vmatprep.subr.mxu0 0.0
    %195 = vmatpush1.msra.mxu0 0.0
    %196 = vmatprep.subr.mxu0 0.0
    %197 = vmatpush1.msra.mxu0 0.0
    %198 = vmatprep.subr.mxu0 0.0
    %199 = vmatpush1.msra.mxu0 0.0
    %200 = vmatprep.subr.mxu0 0.0
    %201 = vmatpush1.msra.mxu0 0.0
    %202 = vmatprep.subr.mxu0 0.0
    %203 = vmatpush1.msra.mxu0 0.0
    %204 = vmatprep.mubr.f32.mxu0 0.0
    %205 = vmatmul.mubr.f32.gmra.mrb[0].mxu0 %v86
    %v206 = vpop.f32.mrb[0].mxu0
    %v207 = vadd.f32 %v77, %v206
    %v208 = vpop.f32.mrb[0].mxu0
    %v209 = vadd.f32 %v81, %v208
    %210 = vmatprep.mubr.f32.mxu0 0.0
    %211 = vmatmul.mubr.f32.gmra.mrb[0].mxu0 %v89
    %v212 = vpop.f32.mrb[0].mxu0
    %v213 = vadd.f32 %v77, %v212
    %v214 = vpop.f32.mrb[0].mxu0
    %v215 = vadd.f32 %v81, %v214
    %216 = vmatprep.mubr.f32.mxu0 0.0
    %217 = vmatmul.mubr.f32.gmra.mrb[0].mxu0 %v92
    %v218 = vpop.f32.mrb[0].mxu0
    %v219 = vadd.f32 %v77, %v218
    %v220 = vpop.f32.mrb[0].mxu0
    %v221 = vadd.f32 %v81, %v220
    %222 = vmatprep.mubr.f32.mxu0 0.0
    %223 = vmatmul.mubr.f32.gmra.mrb[0].mxu0 %v95
    %v224 = vpop.f32.mrb[0].mxu0
    %v225 = vadd.f32 %v77, %v224
    %v226 = vpop.f32.mrb[0].mxu0
    %v227 = vadd.f32 %v81, %v226
    %228 = vmatprep.mubr.f32.mxu0 0.0
    %229 = vmatmul.mubr.f32.gmra.mrb[0].mxu0 %v98
    %v230 = vpop.f32.mrb[0].mxu0
    %v231 = vadd.f32 %v77, %v230
    %v232 = vpop.f32.mrb[0].mxu0
    %v233 = vadd.f32 %v81, %v232
    %234 = vmatprep.mubr.f32.mxu0 0.0
    %235 = vmatmul.mubr.f32.gmra.mrb[0].mxu0 %v101
    %v236 = vpop.f32.mrb[0].mxu0
    %v237 = vadd.f32 %v77, %v236
    %v238 = vpop.f32.mrb[0].mxu0
    %v239 = vadd.f32 %v81, %v238
    %240 = vmatprep.mubr.f32.mxu0 0.0
    %241 = vmatmul.mubr.f32.gmra.mrb[0].mxu0 %v104
    %v242 = vpop.f32.mrb[0].mxu0
    %v243 = vadd.f32 %v77, %v242
    %v244 = vpop.f32.mrb[0].mxu0
    %v245 = vadd.f32 %v81, %v244
    %246 = vmatprep.mubr.f32.mxu0 0.0
    %247 = vmatmul.mubr.f32.gmra.mrb[0].mxu0 %v107
    %v248 = vpop.f32.mrb[0].mxu0
    %v249 = vadd.f32 %v77, %v248
    %v250 = vpop.f32.mrb[0].mxu0
    %v251 = vadd.f32 %v81, %v250
    %252 = vmatprep.mubr.f32.mxu0 0.0
    %253 = vmatmul.mubr.f32.gmra.mrb[0].mxu0 %v110
    %v254 = vpop.f32.mrb[0].mxu0
    %v255 = vadd.f32 %v77, %v254
    %v256 = vpop.f32.mrb[0].mxu0
    %v257 = vadd.f32 %v81, %v256
    %258 = vmatprep.mubr.f32.mxu0 0.0
    %259 = vmatmul.mubr.f32.gmra.mrb[0].mxu0 %v113
    %v260 = vpop.f32.mrb[0].mxu0
    %v261 = vadd.f32 %v77, %v260
    %v262 = vpop.f32.mrb[0].mxu0
    %v263 = vadd.f32 %v81, %v262
    %264 = vmatprep.mubr.f32.mxu0 0.0
    %265 = vmatmul.mubr.f32.gmra.mrb[0].mxu0 %v116
    %v266 = vpop.f32.mrb[0].mxu0
    %v267 = vadd.f32 %v77, %v266
    %v268 = vpop.f32.mrb[0].mxu0
    %v269 = vadd.f32 %v81, %v268
    %270 = vmatprep.mubr.f32.mxu0 0.0
    %271 = vmatmul.mubr.f32.gmra.mrb[0].mxu0 %v119
    %v272 = vpop.f32.mrb[0].mxu0
    %v273 = vadd.f32 %v77, %v272
    %v274 = vpop.f32.mrb[0].mxu0
    %v275 = vadd.f32 %v81, %v274
    %276 = vmatprep.mubr.f32.mxu0 0.0
    %277 = vmatmul.mubr.f32.gmra.mrb[0].mxu0 %v122
    %v278 = vpop.f32.mrb[0].mxu0
    %v279 = vadd.f32 %v77, %v278
    %v280 = vpop.f32.mrb[0].mxu0
    %v281 = vadd.f32 %v81, %v280
    %282 = vmatprep.mubr.f32.mxu0 0.0
    %283 = vmatmul.mubr.f32.gmra.mrb[0].mxu0 %v125
    %v284 = vpop.f32.mrb[0].mxu0
    %v285 = vadd.f32 %v77, %v284
    %v286 = vpop.f32.mrb[0].mxu0
    %v287 = vadd.f32 %v81, %v286
    %288 = vmatprep.mubr.f32.mxu0 0.0
    %289 = vmatmul.mubr.f32.gmra.mrb[0].mxu0 %v128
    %v290 = vpop.f32.mrb[0].mxu0
    %v291 = vadd.f32 %v77, %v290
    %v292 = vpop.f32.mrb[0].mxu0
    %v293 = vadd.f32 %v81, %v292
    %294 = vmatprep.mubr.f32.mxu0 0.0
    %295 = vmatmul.mubr.f32.gmra.mrb[0].mxu0 %v131
    %v296 = vpop.f32.mrb[0].mxu0
    %v297 = vadd.f32 %v77, %v296
    %v298 = vpop.f32.mrb[0].mxu0
    %v299 = vadd.f32 %v81, %v298
    %300 = vdwg.mxu0
    %v301 = vld [vmem:[%s1] sm:$0xff]
    %v302 = vld [vmem:[%s1 + $0x8] sm:$0xff]
    %v303 = vld [vmem:[%s1 + $0x10] sm:$0xff]
    %v304 = vld [vmem:[%s1 + $0x18] sm:$0xff]
    %v305 = vld [vmem:[%s1 + $0x20] sm:$0xff]
    %v306 = vld [vmem:[%s1 + $0x28] sm:$0xff]
    %v307 = vld [vmem:[%s1 + $0x30] sm:$0xff]
    %v308 = vld [vmem:[%s1 + $0x38] sm:$0xff]
    %v309 = vld [vmem:[%s1 + $0x40] sm:$0xff]
    %v310 = vld [vmem:[%s1 + $0x48] sm:$0xff]
    %v311 = vld [vmem:[%s1 + $0x50] sm:$0xff]
    %v312 = vld [vmem:[%s1 + $0x58] sm:$0xff]
    %v313 = vld [vmem:[%s1 + $0x60] sm:$0xff]
    %v314 = vld [vmem:[%s1 + $0x68] sm:$0xff]
    %v315 = vld [vmem:[%s1 + $0x70] sm:$0xff]
    %v316 = vld [vmem:[%s1 + $0x78] sm:$0xff]
    %v317 = vld [vmem:[%s4] sm:$0x1]
    %v319 = vlaneseq
    %v320 = vshrl.u32 %v319, 7
    %v321 = vsub.s32 0, %v320
    %v322 = vrot.slane %v317, %v321
    %356 = vrot.lane.b32.xlu0 %v207, 32
    %v357 = vpop.permute.xlu0 %356
    %358 = vrot.lane.b32.xlu0 %v209, 32
    %v359 = vpop.permute.xlu0 %358
    %360 = vrot.lane.b32.xlu0 %v213, 32
    %v361 = vpop.permute.xlu0 %360
    %362 = vrot.lane.b32.xlu0 %v215, 32
    %v363 = vpop.permute.xlu0 %362
    %364 = vrot.lane.b32.xlu0 %v219, 32
    %v365 = vpop.permute.xlu0 %364
    %366 = vrot.lane.b32.xlu0 %v221, 32
    %v367 = vpop.permute.xlu0 %366
    %368 = vrot.lane.b32.xlu0 %v225, 32
    %v369 = vpop.permute.xlu0 %368
    %370 = vrot.lane.b32.xlu0 %v227, 32
    %v371 = vpop.permute.xlu0 %370
    %372 = vrot.lane.b32.xlu0 %v231, 32
    %v373 = vpop.permute.xlu0 %372
    %374 = vrot.lane.b32.xlu0 %v233, 32
    %v375 = vpop.permute.xlu0 %374
    %376 = vrot.lane.b32.xlu0 %v237, 32
    %v377 = vpop.permute.xlu0 %376
    %378 = vrot.lane.b32.xlu0 %v239, 32
    %v379 = vpop.permute.xlu0 %378
    %380 = vrot.lane.b32.xlu0 %v243, 32
    %v381 = vpop.permute.xlu0 %380
    %382 = vrot.lane.b32.xlu0 %v245, 32
    %v383 = vpop.permute.xlu0 %382
    %384 = vrot.lane.b32.xlu0 %v249, 32
    %v385 = vpop.permute.xlu0 %384
    %386 = vrot.lane.b32.xlu0 %v251, 32
    %v387 = vpop.permute.xlu0 %386
    %388 = vrot.lane.b32.xlu0 %v255, 32
    %v389 = vpop.permute.xlu0 %388
    %390 = vrot.lane.b32.xlu0 %v257, 32
    %v391 = vpop.permute.xlu0 %390
    %392 = vrot.lane.b32.xlu0 %v261, 32
    %v393 = vpop.permute.xlu0 %392
    %394 = vrot.lane.b32.xlu0 %v263, 32
    %v395 = vpop.permute.xlu0 %394
    %396 = vrot.lane.b32.xlu0 %v267, 32
    %v397 = vpop.permute.xlu0 %396
    %398 = vrot.lane.b32.xlu0 %v269, 32
    %v399 = vpop.permute.xlu0 %398
    %400 = vrot.lane.b32.xlu0 %v273, 32
    %v401 = vpop.permute.xlu0 %400
    %402 = vrot.lane.b32.xlu0 %v275, 32
    %v403 = vpop.permute.xlu0 %402
    %404 = vrot.lane.b32.xlu0 %v279, 32
    %v405 = vpop.permute.xlu0 %404
    %406 = vrot.lane.b32.xlu0 %v281, 32
    %v407 = vpop.permute.xlu0 %406
    %408 = vrot.lane.b32.xlu0 %v285, 32
    %v409 = vpop.permute.xlu0 %408
    %410 = vrot.lane.b32.xlu0 %v287, 32
    %v411 = vpop.permute.xlu0 %410
    %412 = vrot.lane.b32.xlu0 %v291, 32
    %v413 = vpop.permute.xlu0 %412
    %414 = vrot.lane.b32.xlu0 %v293, 32
    %v415 = vpop.permute.xlu0 %414
    %416 = vrot.lane.b32.xlu0 %v297, 32
    %v417 = vpop.permute.xlu0 %416
    %418 = vrot.lane.b32.xlu0 %v299, 32
    %v419 = vpop.permute.xlu0 %418
    %vm420 = vcmask 261120
    %v421 = vsel %vm420, %v357, %v359
    %v422 = vsel %vm420, %v361, %v363
    %v423 = vsel %vm420, %v365, %v367
    %v424 = vsel %vm420, %v369, %v371
    %v425 = vsel %vm420, %v373, %v375
    %v426 = vsel %vm420, %v377, %v379
    %v427 = vsel %vm420, %v381, %v383
    %v428 = vsel %vm420, %v385, %v387
    %v429 = vsel %vm420, %v389, %v391
    %v430 = vsel %vm420, %v393, %v395
    %v431 = vsel %vm420, %v397, %v399
    %v432 = vsel %vm420, %v401, %v403
    %v433 = vsel %vm420, %v405, %v407
    %v434 = vsel %vm420, %v409, %v411
    %v435 = vsel %vm420, %v413, %v415
    %v436 = vsel %vm420, %v417, %v419
    %453 = vmatprep.subr.mxu0 0.0
    %454 = vmatpush1.msra.mxu0 %v421
    %455 = vmatprep.subr.mxu0 0.0
    %456 = vmatpush1.msra.mxu0 %v422
    %457 = vmatprep.subr.mxu0 0.0
    %458 = vmatpush1.msra.mxu0 %v423
    %459 = vmatprep.subr.mxu0 0.0
    %460 = vmatpush1.msra.mxu0 %v424
    %461 = vmatprep.subr.mxu0 0.0
    %462 = vmatpush1.msra.mxu0 %v425
    %463 = vmatprep.subr.mxu0 0.0
    %464 = vmatpush1.msra.mxu0 %v426
    %465 = vmatprep.subr.mxu0 0.0
    %466 = vmatpush1.msra.mxu0 %v427
    %467 = vmatprep.subr.mxu0 0.0
    %468 = vmatpush1.msra.mxu0 %v428
    %469 = vmatprep.subr.mxu0 0.0
    %470 = vmatpush1.msra.mxu0 %v429
    %471 = vmatprep.subr.mxu0 0.0
    %472 = vmatpush1.msra.mxu0 %v430
    %473 = vmatprep.subr.mxu0 0.0
    %474 = vmatpush1.msra.mxu0 %v431
    %475 = vmatprep.subr.mxu0 0.0
    %476 = vmatpush1.msra.mxu0 %v432
    %477 = vmatprep.subr.mxu0 0.0
    %478 = vmatpush1.msra.mxu0 %v433
    %479 = vmatprep.subr.mxu0 0.0
    %480 = vmatpush1.msra.mxu0 %v434
    %481 = vmatprep.subr.mxu0 0.0
    %482 = vmatpush1.msra.mxu0 %v435
    %483 = vmatprep.subr.mxu0 0.0
    %484 = vmatpush1.msra.mxu0 %v436
    %485 = vmatprep.subr.mxu0 0.0
    %486 = vmatpush1.msra.mxu0 0.0
    %487 = vmatprep.subr.mxu0 0.0
    %488 = vmatpush1.msra.mxu0 0.0
    %489 = vmatprep.subr.mxu0 0.0
    %490 = vmatpush1.msra.mxu0 0.0
    %491 = vmatprep.subr.mxu0 0.0
    %492 = vmatpush1.msra.mxu0 0.0
    %493 = vmatprep.subr.mxu0 0.0
    %494 = vmatpush1.msra.mxu0 0.0
    %495 = vmatprep.subr.mxu0 0.0
    %496 = vmatpush1.msra.mxu0 0.0
    %497 = vmatprep.subr.mxu0 0.0
    %498 = vmatpush1.msra.mxu0 0.0
    %499 = vmatprep.subr.mxu0 0.0
    %500 = vmatpush1.msra.mxu0 0.0
    %501 = vmatprep.subr.mxu0 0.0
    %502 = vmatpush1.msra.mxu0 0.0
    %503 = vmatprep.subr.mxu0 0.0
    %504 = vmatpush1.msra.mxu0 0.0
    %505 = vmatprep.subr.mxu0 0.0
    %506 = vmatpush1.msra.mxu0 0.0
    %507 = vmatprep.subr.mxu0 0.0
    %508 = vmatpush1.msra.mxu0 0.0
    %509 = vmatprep.subr.mxu0 0.0
    %510 = vmatpush1.msra.mxu0 0.0
    %511 = vmatprep.subr.mxu0 0.0
    %512 = vmatpush1.msra.mxu0 0.0
    %513 = vmatprep.subr.mxu0 0.0
    %514 = vmatpush1.msra.mxu0 0.0
    %515 = vmatprep.subr.mxu0 0.0
    %516 = vmatpush1.msra.mxu0 0.0
    %517 = vmatprep.mubr.f32.mxu0 0.0
    %518 = vmatmul.mubr.f32.gmra.mrb[0].mxu0 %v301
    %v519 = vpop.f32.mrb[0].mxu0
    %v520 = vadd.f32 %v322, %v519
    %v521 = vpop.f32.mrb[0].mxu0
    %522 = vmatprep.mubr.f32.mxu0 0.0
    %523 = vmatmul.mubr.f32.gmra.mrb[0].mxu0 %v302
    %v524 = vpop.f32.mrb[0].mxu0
    %v525 = vadd.f32 %v322, %v524
    %v526 = vpop.f32.mrb[0].mxu0
    %527 = vmatprep.mubr.f32.mxu0 0.0
    %528 = vmatmul.mubr.f32.gmra.mrb[0].mxu0 %v303
    %v529 = vpop.f32.mrb[0].mxu0
    %v530 = vadd.f32 %v322, %v529
    %v531 = vpop.f32.mrb[0].mxu0
    %532 = vmatprep.mubr.f32.mxu0 0.0
    %533 = vmatmul.mubr.f32.gmra.mrb[0].mxu0 %v304
    %v534 = vpop.f32.mrb[0].mxu0
    %v535 = vadd.f32 %v322, %v534
    %v536 = vpop.f32.mrb[0].mxu0
    %537 = vmatprep.mubr.f32.mxu0 0.0
    %538 = vmatmul.mubr.f32.gmra.mrb[0].mxu0 %v305
    %v539 = vpop.f32.mrb[0].mxu0
    %v540 = vadd.f32 %v322, %v539
    %v541 = vpop.f32.mrb[0].mxu0
    %542 = vmatprep.mubr.f32.mxu0 0.0
    %543 = vmatmul.mubr.f32.gmra.mrb[0].mxu0 %v306
    %v544 = vpop.f32.mrb[0].mxu0
    %v545 = vadd.f32 %v322, %v544
    %v546 = vpop.f32.mrb[0].mxu0
    %547 = vmatprep.mubr.f32.mxu0 0.0
    %548 = vmatmul.mubr.f32.gmra.mrb[0].mxu0 %v307
    %v549 = vpop.f32.mrb[0].mxu0
    %v550 = vadd.f32 %v322, %v549
    %v551 = vpop.f32.mrb[0].mxu0
    %552 = vmatprep.mubr.f32.mxu0 0.0
    %553 = vmatmul.mubr.f32.gmra.mrb[0].mxu0 %v308
    %v554 = vpop.f32.mrb[0].mxu0
    %v555 = vadd.f32 %v322, %v554
    %v556 = vpop.f32.mrb[0].mxu0
    %557 = vmatprep.mubr.f32.mxu0 0.0
    %558 = vmatmul.mubr.f32.gmra.mrb[0].mxu0 %v309
    %v559 = vpop.f32.mrb[0].mxu0
    %v560 = vadd.f32 %v322, %v559
    %v561 = vpop.f32.mrb[0].mxu0
    %562 = vmatprep.mubr.f32.mxu0 0.0
    %563 = vmatmul.mubr.f32.gmra.mrb[0].mxu0 %v310
    %v564 = vpop.f32.mrb[0].mxu0
    %v565 = vadd.f32 %v322, %v564
    %v566 = vpop.f32.mrb[0].mxu0
    %567 = vmatprep.mubr.f32.mxu0 0.0
    %568 = vmatmul.mubr.f32.gmra.mrb[0].mxu0 %v311
    %v569 = vpop.f32.mrb[0].mxu0
    %v570 = vadd.f32 %v322, %v569
    %v571 = vpop.f32.mrb[0].mxu0
    %572 = vmatprep.mubr.f32.mxu0 0.0
    %573 = vmatmul.mubr.f32.gmra.mrb[0].mxu0 %v312
    %v574 = vpop.f32.mrb[0].mxu0
    %v575 = vadd.f32 %v322, %v574
    %v576 = vpop.f32.mrb[0].mxu0
    %577 = vmatprep.mubr.f32.mxu0 0.0
    %578 = vmatmul.mubr.f32.gmra.mrb[0].mxu0 %v313
    %v579 = vpop.f32.mrb[0].mxu0
    %v580 = vadd.f32 %v322, %v579
    %v581 = vpop.f32.mrb[0].mxu0
    %582 = vmatprep.mubr.f32.mxu0 0.0
    %583 = vmatmul.mubr.f32.gmra.mrb[0].mxu0 %v314
    %v584 = vpop.f32.mrb[0].mxu0
    %v585 = vadd.f32 %v322, %v584
    %v586 = vpop.f32.mrb[0].mxu0
    %587 = vmatprep.mubr.f32.mxu0 0.0
    %588 = vmatmul.mubr.f32.gmra.mrb[0].mxu0 %v315
    %v589 = vpop.f32.mrb[0].mxu0
    %v590 = vadd.f32 %v322, %v589
    %v591 = vpop.f32.mrb[0].mxu0
    %592 = vmatprep.mubr.f32.mxu0 0.0
    %593 = vmatmul.mubr.f32.gmra.mrb[0].mxu0 %v316
    %v594 = vpop.f32.mrb[0].mxu0
    %v595 = vadd.f32 %v322, %v594
    %v596 = vpop.f32.mrb[0].mxu0
    %597 = vdwg.mxu0
    %v598 = vmax.f32 %v520, 0.0
    %v599 = vmax.f32 %v525, 0.0
    %v600 = vmax.f32 %v530, 0.0
    %v601 = vmax.f32 %v535, 0.0
    %v602 = vmax.f32 %v540, 0.0
    %v603 = vmax.f32 %v545, 0.0
    %v604 = vmax.f32 %v550, 0.0
    %v605 = vmax.f32 %v555, 0.0
    %v606 = vmax.f32 %v560, 0.0
    %v607 = vmax.f32 %v565, 0.0
    %v608 = vmax.f32 %v570, 0.0
    %v609 = vmax.f32 %v575, 0.0
    %v610 = vmax.f32 %v580, 0.0
    %v611 = vmax.f32 %v585, 0.0
    %v612 = vmax.f32 %v590, 0.0
    %v613 = vmax.f32 %v595, 0.0
    %630 = vrot.lane.b32.xlu0 %v520, 96
    %v631 = vpop.permute.xlu0 %630
    %632 = vrot.lane.b32.xlu0 %v525, 96
    %v633 = vpop.permute.xlu0 %632
    %634 = vrot.lane.b32.xlu0 %v530, 96
    %v635 = vpop.permute.xlu0 %634
    %636 = vrot.lane.b32.xlu0 %v535, 96
    %v637 = vpop.permute.xlu0 %636
    %638 = vrot.lane.b32.xlu0 %v540, 96
    %v639 = vpop.permute.xlu0 %638
    %640 = vrot.lane.b32.xlu0 %v545, 96
    %v641 = vpop.permute.xlu0 %640
    %642 = vrot.lane.b32.xlu0 %v550, 96
    %v643 = vpop.permute.xlu0 %642
    %644 = vrot.lane.b32.xlu0 %v555, 96
    %v645 = vpop.permute.xlu0 %644
    %646 = vrot.lane.b32.xlu0 %v560, 96
    %v647 = vpop.permute.xlu0 %646
    %648 = vrot.lane.b32.xlu0 %v565, 96
    %v649 = vpop.permute.xlu0 %648
    %650 = vrot.lane.b32.xlu0 %v570, 96
    %v651 = vpop.permute.xlu0 %650
    %652 = vrot.lane.b32.xlu0 %v575, 96
    %v653 = vpop.permute.xlu0 %652
    %654 = vrot.lane.b32.xlu0 %v580, 96
    %v655 = vpop.permute.xlu0 %654
    %656 = vrot.lane.b32.xlu0 %v585, 96
    %v657 = vpop.permute.xlu0 %656
    %658 = vrot.lane.b32.xlu0 %v590, 96
    %v659 = vpop.permute.xlu0 %658
    %660 = vrot.lane.b32.xlu0 %v595, 96
    %v661 = vpop.permute.xlu0 %660
    %v678 = vadd.f32 %v598, %v631
    %v679 = vadd.f32 %v599, %v633
    %v680 = vadd.f32 %v600, %v635
    %v681 = vadd.f32 %v601, %v637
    %v682 = vadd.f32 %v602, %v639
    %v683 = vadd.f32 %v603, %v641
    %v684 = vadd.f32 %v604, %v643
    %v685 = vadd.f32 %v605, %v645
    %v686 = vadd.f32 %v606, %v647
    %v687 = vadd.f32 %v607, %v649
    %v688 = vadd.f32 %v608, %v651
    %v689 = vadd.f32 %v609, %v653
    %v690 = vadd.f32 %v610, %v655
    %v691 = vadd.f32 %v611, %v657
    %v692 = vadd.f32 %v612, %v659
    %v693 = vadd.f32 %v613, %v661
    %v694 = vld [vmem:[%s5] sm:$0xff]
    %v695 = vld [vmem:[%s5 + $0x8] sm:$0xff]
    %v696 = vld [vmem:[%s5 + $0x10] sm:$0xff]
    %v697 = vld [vmem:[%s5 + $0x18] sm:$0xff]
    %v698 = vld [vmem:[%s6] sm:$0x1]
    %v700 = vlaneseq
    %v701 = vshrl.u32 %v700, 7
    %v702 = vsub.s32 0, %v701
    %v703 = vrot.slane %v698, %v702
    %v706 = vsel %vm420, %v678, 0
    %v709 = vsel %vm420, %v679, 0
    %v712 = vsel %vm420, %v680, 0
    %v715 = vsel %vm420, %v681, 0
    %v718 = vsel %vm420, %v682, 0
    %v721 = vsel %vm420, %v683, 0
    %v724 = vsel %vm420, %v684, 0
    %v727 = vsel %vm420, %v685, 0
    %v730 = vsel %vm420, %v686, 0
    %v733 = vsel %vm420, %v687, 0
    %v736 = vsel %vm420, %v688, 0
    %v739 = vsel %vm420, %v689, 0
    %v742 = vsel %vm420, %v690, 0
    %v745 = vsel %vm420, %v691, 0
    %v748 = vsel %vm420, %v692, 0
    %v751 = vsel %vm420, %v693, 0
    %753 = vmatprep.subr.mxu0 0.0
    %754 = vmatpush1.msra.mxu0 %v694
    %755 = vmatprep.subr.mxu0 0.0
    %756 = vmatpush1.msra.mxu0 %v695
    %757 = vmatprep.subr.mxu0 0.0
    %758 = vmatpush1.msra.mxu0 %v696
    %759 = vmatprep.subr.mxu0 0.0
    %760 = vmatpush1.msra.mxu0 %v697
    %761 = vmatprep.subr.mxu0 0.0
    %762 = vmatpush1.msra.mxu0 0.0
    %763 = vmatprep.subr.mxu0 0.0
    %764 = vmatpush1.msra.mxu0 0.0
    %765 = vmatprep.subr.mxu0 0.0
    %766 = vmatpush1.msra.mxu0 0.0
    %767 = vmatprep.subr.mxu0 0.0
    %768 = vmatpush1.msra.mxu0 0.0
    %769 = vmatprep.subr.mxu0 0.0
    %770 = vmatpush1.msra.mxu0 0.0
    %771 = vmatprep.subr.mxu0 0.0
    %772 = vmatpush1.msra.mxu0 0.0
    %773 = vmatprep.subr.mxu0 0.0
    %774 = vmatpush1.msra.mxu0 0.0
    %775 = vmatprep.subr.mxu0 0.0
    %776 = vmatpush1.msra.mxu0 0.0
    %777 = vmatprep.subr.mxu0 0.0
    %778 = vmatpush1.msra.mxu0 0.0
    %779 = vmatprep.subr.mxu0 0.0
    %780 = vmatpush1.msra.mxu0 0.0
    %781 = vmatprep.subr.mxu0 0.0
    %782 = vmatpush1.msra.mxu0 0.0
    %783 = vmatprep.subr.mxu0 0.0
    %784 = vmatpush1.msra.mxu0 0.0
    %785 = vmatprep.subr.mxu0 0.0
    %786 = vmatpush1.msra.mxu0 0.0
    %787 = vmatprep.subr.mxu0 0.0
    %788 = vmatpush1.msra.mxu0 0.0
    %789 = vmatprep.subr.mxu0 0.0
    %790 = vmatpush1.msra.mxu0 0.0
    %791 = vmatprep.subr.mxu0 0.0
    %792 = vmatpush1.msra.mxu0 0.0
    %793 = vmatprep.subr.mxu0 0.0
    %794 = vmatpush1.msra.mxu0 0.0
    %795 = vmatprep.subr.mxu0 0.0
    %796 = vmatpush1.msra.mxu0 0.0
    %797 = vmatprep.subr.mxu0 0.0
    %798 = vmatpush1.msra.mxu0 0.0
    %799 = vmatprep.subr.mxu0 0.0
    %800 = vmatpush1.msra.mxu0 0.0
    %801 = vmatprep.subr.mxu0 0.0
    %802 = vmatpush1.msra.mxu0 0.0
    %803 = vmatprep.subr.mxu0 0.0
    %804 = vmatpush1.msra.mxu0 0.0
    %805 = vmatprep.subr.mxu0 0.0
    %806 = vmatpush1.msra.mxu0 0.0
    %807 = vmatprep.subr.mxu0 0.0
    %808 = vmatpush1.msra.mxu0 0.0
    %809 = vmatprep.subr.mxu0 0.0
    %810 = vmatpush1.msra.mxu0 0.0
    %811 = vmatprep.subr.mxu0 0.0
    %812 = vmatpush1.msra.mxu0 0.0
    %813 = vmatprep.subr.mxu0 0.0
    %814 = vmatpush1.msra.mxu0 0.0
    %815 = vmatprep.subr.mxu0 0.0
    %816 = vmatpush1.msra.mxu0 0.0
    %817 = vmatprep.mubr.f32.mxu0 0.0
    %818 = vmatmul.mubr.f32.gmra.mrb[0].mxu0 %v706
    %v819 = vpop.f32.mrb[0].mxu0
    %v820 = vadd.f32 %v703, %v819
    %v821 = vpop.f32.mrb[0].mxu0
    %822 = vmatprep.mubr.f32.mxu0 0.0
    %823 = vmatmul.mubr.f32.gmra.mrb[0].mxu0 %v709
    %v824 = vpop.f32.mrb[0].mxu0
    %v825 = vadd.f32 %v703, %v824
    %v826 = vpop.f32.mrb[0].mxu0
    %827 = vmatprep.mubr.f32.mxu0 0.0
    %828 = vmatmul.mubr.f32.gmra.mrb[0].mxu0 %v712
    %v829 = vpop.f32.mrb[0].mxu0
    %v830 = vadd.f32 %v703, %v829
    %v831 = vpop.f32.mrb[0].mxu0
    %832 = vmatprep.mubr.f32.mxu0 0.0
    %833 = vmatmul.mubr.f32.gmra.mrb[0].mxu0 %v715
    %v834 = vpop.f32.mrb[0].mxu0
    %v835 = vadd.f32 %v703, %v834
    %v836 = vpop.f32.mrb[0].mxu0
    %837 = vmatprep.mubr.f32.mxu0 0.0
    %838 = vmatmul.mubr.f32.gmra.mrb[0].mxu0 %v718
    %v839 = vpop.f32.mrb[0].mxu0
    %v840 = vadd.f32 %v703, %v839
    %v841 = vpop.f32.mrb[0].mxu0
    %842 = vmatprep.mubr.f32.mxu0 0.0
    %843 = vmatmul.mubr.f32.gmra.mrb[0].mxu0 %v721
    %v844 = vpop.f32.mrb[0].mxu0
    %v845 = vadd.f32 %v703, %v844
    %v846 = vpop.f32.mrb[0].mxu0
    %847 = vmatprep.mubr.f32.mxu0 0.0
    %848 = vmatmul.mubr.f32.gmra.mrb[0].mxu0 %v724
    %v849 = vpop.f32.mrb[0].mxu0
    %v850 = vadd.f32 %v703, %v849
    %v851 = vpop.f32.mrb[0].mxu0
    %852 = vmatprep.mubr.f32.mxu0 0.0
    %853 = vmatmul.mubr.f32.gmra.mrb[0].mxu0 %v727
    %v854 = vpop.f32.mrb[0].mxu0
    %v855 = vadd.f32 %v703, %v854
    %v856 = vpop.f32.mrb[0].mxu0
    %857 = vmatprep.mubr.f32.mxu0 0.0
    %858 = vmatmul.mubr.f32.gmra.mrb[0].mxu0 %v730
    %v859 = vpop.f32.mrb[0].mxu0
    %v860 = vadd.f32 %v703, %v859
    %v861 = vpop.f32.mrb[0].mxu0
    %862 = vmatprep.mubr.f32.mxu0 0.0
    %863 = vmatmul.mubr.f32.gmra.mrb[0].mxu0 %v733
    %v864 = vpop.f32.mrb[0].mxu0
    %v865 = vadd.f32 %v703, %v864
    %v866 = vpop.f32.mrb[0].mxu0
    %867 = vmatprep.mubr.f32.mxu0 0.0
    %868 = vmatmul.mubr.f32.gmra.mrb[0].mxu0 %v736
    %v869 = vpop.f32.mrb[0].mxu0
    %v870 = vadd.f32 %v703, %v869
    %v871 = vpop.f32.mrb[0].mxu0
    %872 = vmatprep.mubr.f32.mxu0 0.0
    %873 = vmatmul.mubr.f32.gmra.mrb[0].mxu0 %v739
    %v874 = vpop.f32.mrb[0].mxu0
    %v875 = vadd.f32 %v703, %v874
    %v876 = vpop.f32.mrb[0].mxu0
    %877 = vmatprep.mubr.f32.mxu0 0.0
    %878 = vmatmul.mubr.f32.gmra.mrb[0].mxu0 %v742
    %v879 = vpop.f32.mrb[0].mxu0
    %v880 = vadd.f32 %v703, %v879
    %v881 = vpop.f32.mrb[0].mxu0
    %882 = vmatprep.mubr.f32.mxu0 0.0
    %883 = vmatmul.mubr.f32.gmra.mrb[0].mxu0 %v745
    %v884 = vpop.f32.mrb[0].mxu0
    %v885 = vadd.f32 %v703, %v884
    %v886 = vpop.f32.mrb[0].mxu0
    %887 = vmatprep.mubr.f32.mxu0 0.0
    %888 = vmatmul.mubr.f32.gmra.mrb[0].mxu0 %v748
    %v889 = vpop.f32.mrb[0].mxu0
    %v890 = vadd.f32 %v703, %v889
    %v891 = vpop.f32.mrb[0].mxu0
    %892 = vmatprep.mubr.f32.mxu0 0.0
    %893 = vmatmul.mubr.f32.gmra.mrb[0].mxu0 %v751
    %v894 = vpop.f32.mrb[0].mxu0
    %v895 = vadd.f32 %v703, %v894
    %v896 = vpop.f32.mrb[0].mxu0
    %897 = vdwg.mxu0
    %v898 = vadd.f32 %v820, %v207
    %v899 = vadd.f32 %v825, %v213
    %v900 = vadd.f32 %v830, %v219
    %v901 = vadd.f32 %v835, %v225
    %v902 = vadd.f32 %v840, %v231
    %v903 = vadd.f32 %v845, %v237
    %v904 = vadd.f32 %v850, %v243
    %v905 = vadd.f32 %v855, %v249
    %v906 = vadd.f32 %v860, %v255
    %v907 = vadd.f32 %v865, %v261
    %v908 = vadd.f32 %v870, %v267
    %v909 = vadd.f32 %v875, %v273
    %v910 = vadd.f32 %v880, %v279
    %v911 = vadd.f32 %v885, %v285
    %v912 = vadd.f32 %v890, %v291
    %v913 = vadd.f32 %v895, %v297
    %v914 = vxor.u32 %v898, 2147483648
    %v915 = vxor.u32 %v899, 2147483648
    %v916 = vxor.u32 %v900, 2147483648
    %v917 = vxor.u32 %v901, 2147483648
    %v918 = vxor.u32 %v902, 2147483648
    %v919 = vxor.u32 %v903, 2147483648
    %v920 = vxor.u32 %v904, 2147483648
    %v921 = vxor.u32 %v905, 2147483648
    %v922 = vxor.u32 %v906, 2147483648
    %v923 = vxor.u32 %v907, 2147483648
    %v924 = vxor.u32 %v908, 2147483648
    %v925 = vxor.u32 %v909, 2147483648
    %v926 = vxor.u32 %v910, 2147483648
    %v927 = vxor.u32 %v911, 2147483648
    %v928 = vxor.u32 %v912, 2147483648
    %v929 = vxor.u32 %v913, 2147483648
    %v930 = vmul.f32 %v914, 1.442695
    %v931 = vpow.pop %v930
    %v932 = vmul.f32 %v915, 1.442695
    %v933 = vpow.pop %v932
    %v934 = vmul.f32 %v916, 1.442695
    %v935 = vpow.pop %v934
    %v936 = vmul.f32 %v917, 1.442695
    %v937 = vpow.pop %v936
    %v938 = vmul.f32 %v918, 1.442695
    %v939 = vpow.pop %v938
    %v940 = vmul.f32 %v919, 1.442695
    %v941 = vpow.pop %v940
    %v942 = vmul.f32 %v920, 1.442695
    %v943 = vpow.pop %v942
    %v944 = vmul.f32 %v921, 1.442695
    %v945 = vpow.pop %v944
    %v946 = vmul.f32 %v922, 1.442695
    %v947 = vpow.pop %v946
    %v948 = vmul.f32 %v923, 1.442695
    %v949 = vpow.pop %v948
    %v950 = vmul.f32 %v924, 1.442695
    %v951 = vpow.pop %v950
    %v952 = vmul.f32 %v925, 1.442695
    %v953 = vpow.pop %v952
    %v954 = vmul.f32 %v926, 1.442695
    %v955 = vpow.pop %v954
    %v956 = vmul.f32 %v927, 1.442695
    %v957 = vpow.pop %v956
    %v958 = vmul.f32 %v928, 1.442695
    %v959 = vpow.pop %v958
    %v960 = vmul.f32 %v929, 1.442695
    %v961 = vpow.pop %v960
    %v962 = vadd.f32 %v931, 1.0
    %v963 = vadd.f32 %v933, 1.0
    %v964 = vadd.f32 %v935, 1.0
    %v965 = vadd.f32 %v937, 1.0
    %v966 = vadd.f32 %v939, 1.0
    %v967 = vadd.f32 %v941, 1.0
    %v968 = vadd.f32 %v943, 1.0
    %v969 = vadd.f32 %v945, 1.0
    %v970 = vadd.f32 %v947, 1.0
    %v971 = vadd.f32 %v949, 1.0
    %v972 = vadd.f32 %v951, 1.0
    %v973 = vadd.f32 %v953, 1.0
    %v974 = vadd.f32 %v955, 1.0
    %v975 = vadd.f32 %v957, 1.0
    %v976 = vadd.f32 %v959, 1.0
    %v977 = vadd.f32 %v961, 1.0
    %v978 = vrcp.pop %v962
    %v979 = vmul.f32 1.0, %v978
    %v980 = vrcp.pop %v963
    %v981 = vmul.f32 1.0, %v980
    %v982 = vrcp.pop %v964
    %v983 = vmul.f32 1.0, %v982
    %v984 = vrcp.pop %v965
    %v985 = vmul.f32 1.0, %v984
    %v986 = vrcp.pop %v966
    %v987 = vmul.f32 1.0, %v986
    %v988 = vrcp.pop %v967
    %v989 = vmul.f32 1.0, %v988
    %v990 = vrcp.pop %v968
    %v991 = vmul.f32 1.0, %v990
    %v992 = vrcp.pop %v969
    %v993 = vmul.f32 1.0, %v992
    %v994 = vrcp.pop %v970
    %v995 = vmul.f32 1.0, %v994
    %v996 = vrcp.pop %v971
    %v997 = vmul.f32 1.0, %v996
    %v998 = vrcp.pop %v972
    %v999 = vmul.f32 1.0, %v998
    %v1000 = vrcp.pop %v973
    %v1001 = vmul.f32 1.0, %v1000
    %v1002 = vrcp.pop %v974
    %v1003 = vmul.f32 1.0, %v1002
    %v1004 = vrcp.pop %v975
    %v1005 = vmul.f32 1.0, %v1004
    %v1006 = vrcp.pop %v976
    %v1007 = vmul.f32 1.0, %v1006
    %v1008 = vrcp.pop %v977
    %v1009 = vmul.f32 1.0, %v1008
    %1010 = vrot.lane.b32.xlu0 %v207, 64
    %v1011 = vpop.permute.xlu0 %1010
    %1012 = vrot.lane.b32.xlu0 %v213, 64
    %v1013 = vpop.permute.xlu0 %1012
    %1014 = vrot.lane.b32.xlu0 %v219, 64
    %v1015 = vpop.permute.xlu0 %1014
    %1016 = vrot.lane.b32.xlu0 %v225, 64
    %v1017 = vpop.permute.xlu0 %1016
    %1018 = vrot.lane.b32.xlu0 %v231, 64
    %v1019 = vpop.permute.xlu0 %1018
    %1020 = vrot.lane.b32.xlu0 %v237, 64
    %v1021 = vpop.permute.xlu0 %1020
    %1022 = vrot.lane.b32.xlu0 %v243, 64
    %v1023 = vpop.permute.xlu0 %1022
    %1024 = vrot.lane.b32.xlu0 %v249, 64
    %v1025 = vpop.permute.xlu0 %1024
    %1026 = vrot.lane.b32.xlu0 %v255, 64
    %v1027 = vpop.permute.xlu0 %1026
    %1028 = vrot.lane.b32.xlu0 %v261, 64
    %v1029 = vpop.permute.xlu0 %1028
    %1030 = vrot.lane.b32.xlu0 %v267, 64
    %v1031 = vpop.permute.xlu0 %1030
    %1032 = vrot.lane.b32.xlu0 %v273, 64
    %v1033 = vpop.permute.xlu0 %1032
    %1034 = vrot.lane.b32.xlu0 %v279, 64
    %v1035 = vpop.permute.xlu0 %1034
    %1036 = vrot.lane.b32.xlu0 %v285, 64
    %v1037 = vpop.permute.xlu0 %1036
    %1038 = vrot.lane.b32.xlu0 %v291, 64
    %v1039 = vpop.permute.xlu0 %1038
    %1040 = vrot.lane.b32.xlu0 %v297, 64
    %v1041 = vpop.permute.xlu0 %1040
    %v1058 = vmul.f32 %v979, %v1011
    %v1059 = vmul.f32 %v981, %v1013
    %v1060 = vmul.f32 %v983, %v1015
    %v1061 = vmul.f32 %v985, %v1017
    %v1062 = vmul.f32 %v987, %v1019
    %v1063 = vmul.f32 %v989, %v1021
    %v1064 = vmul.f32 %v991, %v1023
    %v1065 = vmul.f32 %v993, %v1025
    %v1066 = vmul.f32 %v995, %v1027
    %v1067 = vmul.f32 %v997, %v1029
    %v1068 = vmul.f32 %v999, %v1031
    %v1069 = vmul.f32 %v1001, %v1033
    %v1070 = vmul.f32 %v1003, %v1035
    %v1071 = vmul.f32 %v1005, %v1037
    %v1072 = vmul.f32 %v1007, %v1039
    %v1073 = vmul.f32 %v1009, %v1041
    %1090 = vrot.lane.b32.xlu0 %v1058, 64
    %v1091 = vpop.permute.xlu0 %1090
    %1092 = vrot.lane.b32.xlu0 %v1059, 64
    %v1093 = vpop.permute.xlu0 %1092
    %1094 = vrot.lane.b32.xlu0 %v1060, 64
    %v1095 = vpop.permute.xlu0 %1094
    %1096 = vrot.lane.b32.xlu0 %v1061, 64
    %v1097 = vpop.permute.xlu0 %1096
    %1098 = vrot.lane.b32.xlu0 %v1062, 64
    %v1099 = vpop.permute.xlu0 %1098
    %1100 = vrot.lane.b32.xlu0 %v1063, 64
    %v1101 = vpop.permute.xlu0 %1100
    %1102 = vrot.lane.b32.xlu0 %v1064, 64
    %v1103 = vpop.permute.xlu0 %1102
    %1104 = vrot.lane.b32.xlu0 %v1065, 64
    %v1105 = vpop.permute.xlu0 %1104
    %1106 = vrot.lane.b32.xlu0 %v1066, 64
    %v1107 = vpop.permute.xlu0 %1106
    %1108 = vrot.lane.b32.xlu0 %v1067, 64
    %v1109 = vpop.permute.xlu0 %1108
    %1110 = vrot.lane.b32.xlu0 %v1068, 64
    %v1111 = vpop.permute.xlu0 %1110
    %1112 = vrot.lane.b32.xlu0 %v1069, 64
    %v1113 = vpop.permute.xlu0 %1112
    %1114 = vrot.lane.b32.xlu0 %v1070, 64
    %v1115 = vpop.permute.xlu0 %1114
    %1116 = vrot.lane.b32.xlu0 %v1071, 64
    %v1117 = vpop.permute.xlu0 %1116
    %1118 = vrot.lane.b32.xlu0 %v1072, 64
    %v1119 = vpop.permute.xlu0 %1118
    %1120 = vrot.lane.b32.xlu0 %v1073, 64
    %v1121 = vpop.permute.xlu0 %1120
    %v1138 = vadd.f32 %v820, %v1091
    %v1139 = vadd.f32 %v825, %v1093
    %v1140 = vadd.f32 %v830, %v1095
    %v1141 = vadd.f32 %v835, %v1097
    %v1142 = vadd.f32 %v840, %v1099
    %v1143 = vadd.f32 %v845, %v1101
    %v1144 = vadd.f32 %v850, %v1103
    %v1145 = vadd.f32 %v855, %v1105
    %v1146 = vadd.f32 %v860, %v1107
    %v1147 = vadd.f32 %v865, %v1109
    %v1148 = vadd.f32 %v870, %v1111
    %v1149 = vadd.f32 %v875, %v1113
    %v1150 = vadd.f32 %v880, %v1115
    %v1151 = vadd.f32 %v885, %v1117
    %v1152 = vadd.f32 %v890, %v1119
    %v1153 = vadd.f32 %v895, %v1121
    %v1154 = vtanh.pop %v1138
    %v1155 = vtanh.pop %v1139
    %v1156 = vtanh.pop %v1140
    %v1157 = vtanh.pop %v1141
    %v1158 = vtanh.pop %v1142
    %v1159 = vtanh.pop %v1143
    %v1160 = vtanh.pop %v1144
    %v1161 = vtanh.pop %v1145
    %v1162 = vtanh.pop %v1146
    %v1163 = vtanh.pop %v1147
    %v1164 = vtanh.pop %v1148
    %v1165 = vtanh.pop %v1149
    %v1166 = vtanh.pop %v1150
    %v1167 = vtanh.pop %v1151
    %v1168 = vtanh.pop %v1152
    %v1169 = vtanh.pop %v1153
    %v1170 = vsub.f32 1.0, %v979
    %v1171 = vsub.f32 1.0, %v981
    %v1172 = vsub.f32 1.0, %v983
    %v1173 = vsub.f32 1.0, %v985
    %v1174 = vsub.f32 1.0, %v987
    %v1175 = vsub.f32 1.0, %v989
    %v1176 = vsub.f32 1.0, %v991
    %v1177 = vsub.f32 1.0, %v993
    %v1178 = vsub.f32 1.0, %v995
    %v1179 = vsub.f32 1.0, %v997
    %v1180 = vsub.f32 1.0, %v999
    %v1181 = vsub.f32 1.0, %v1001
    %v1182 = vsub.f32 1.0, %v1003
    %v1183 = vsub.f32 1.0, %v1005
    %v1184 = vsub.f32 1.0, %v1007
    %v1185 = vsub.f32 1.0, %v1009
    %1202 = vrot.lane.b32.xlu0 %v1154, 96
    %v1203 = vpop.permute.xlu0 %1202
    %1204 = vrot.lane.b32.xlu0 %v1155, 96
    %v1205 = vpop.permute.xlu0 %1204
    %1206 = vrot.lane.b32.xlu0 %v1156, 96
    %v1207 = vpop.permute.xlu0 %1206
    %1208 = vrot.lane.b32.xlu0 %v1157, 96
    %v1209 = vpop.permute.xlu0 %1208
    %1210 = vrot.lane.b32.xlu0 %v1158, 96
    %v1211 = vpop.permute.xlu0 %1210
    %1212 = vrot.lane.b32.xlu0 %v1159, 96
    %v1213 = vpop.permute.xlu0 %1212
    %1214 = vrot.lane.b32.xlu0 %v1160, 96
    %v1215 = vpop.permute.xlu0 %1214
    %1216 = vrot.lane.b32.xlu0 %v1161, 96
    %v1217 = vpop.permute.xlu0 %1216
    %1218 = vrot.lane.b32.xlu0 %v1162, 96
    %v1219 = vpop.permute.xlu0 %1218
    %1220 = vrot.lane.b32.xlu0 %v1163, 96
    %v1221 = vpop.permute.xlu0 %1220
    %1222 = vrot.lane.b32.xlu0 %v1164, 96
    %v1223 = vpop.permute.xlu0 %1222
    %1224 = vrot.lane.b32.xlu0 %v1165, 96
    %v1225 = vpop.permute.xlu0 %1224
    %1226 = vrot.lane.b32.xlu0 %v1166, 96
    %v1227 = vpop.permute.xlu0 %1226
    %1228 = vrot.lane.b32.xlu0 %v1167, 96
    %v1229 = vpop.permute.xlu0 %1228
    %1230 = vrot.lane.b32.xlu0 %v1168, 96
    %v1231 = vpop.permute.xlu0 %1230
    %1232 = vrot.lane.b32.xlu0 %v1169, 96
    %v1233 = vpop.permute.xlu0 %1232
    %v1250 = vmul.f32 %v1170, %v1203
    %v1251 = vmul.f32 %v1171, %v1205
    %v1252 = vmul.f32 %v1172, %v1207
    %v1253 = vmul.f32 %v1173, %v1209
    %v1254 = vmul.f32 %v1174, %v1211
    %v1255 = vmul.f32 %v1175, %v1213
    %v1256 = vmul.f32 %v1176, %v1215
    %v1257 = vmul.f32 %v1177, %v1217
    %v1258 = vmul.f32 %v1178, %v1219
    %v1259 = vmul.f32 %v1179, %v1221
    %v1260 = vmul.f32 %v1180, %v1223
    %v1261 = vmul.f32 %v1181, %v1225
    %v1262 = vmul.f32 %v1182, %v1227
    %v1263 = vmul.f32 %v1183, %v1229
    %v1264 = vmul.f32 %v1184, %v1231
    %v1265 = vmul.f32 %v1185, %v1233
    %1266 = vrot.lane.b32.xlu0 %v46, 32
    %v1267 = vpop.permute.xlu0 %1266
    %1268 = vrot.lane.b32.xlu0 %v47, 32
    %v1269 = vpop.permute.xlu0 %1268
    %1270 = vrot.lane.b32.xlu0 %v48, 32
    %v1271 = vpop.permute.xlu0 %1270
    %1272 = vrot.lane.b32.xlu0 %v49, 32
    %v1273 = vpop.permute.xlu0 %1272
    %1274 = vrot.lane.b32.xlu0 %v50, 32
    %v1275 = vpop.permute.xlu0 %1274
    %1276 = vrot.lane.b32.xlu0 %v51, 32
    %v1277 = vpop.permute.xlu0 %1276
    %1278 = vrot.lane.b32.xlu0 %v52, 32
    %v1279 = vpop.permute.xlu0 %1278
    %1280 = vrot.lane.b32.xlu0 %v53, 32
    %v1281 = vpop.permute.xlu0 %1280
    %1282 = vrot.lane.b32.xlu0 %v54, 32
    %v1283 = vpop.permute.xlu0 %1282
    %1284 = vrot.lane.b32.xlu0 %v55, 32
    %v1285 = vpop.permute.xlu0 %1284
    %1286 = vrot.lane.b32.xlu0 %v56, 32
    %v1287 = vpop.permute.xlu0 %1286
    %1288 = vrot.lane.b32.xlu0 %v57, 32
    %v1289 = vpop.permute.xlu0 %1288
    %1290 = vrot.lane.b32.xlu0 %v58, 32
    %v1291 = vpop.permute.xlu0 %1290
    %1292 = vrot.lane.b32.xlu0 %v59, 32
    %v1293 = vpop.permute.xlu0 %1292
    %1294 = vrot.lane.b32.xlu0 %v60, 32
    %v1295 = vpop.permute.xlu0 %1294
    %1296 = vrot.lane.b32.xlu0 %v61, 32
    %v1297 = vpop.permute.xlu0 %1296
    %v1314 = vmul.f32 %v979, %v1267
    %v1315 = vmul.f32 %v981, %v1269
    %v1316 = vmul.f32 %v983, %v1271
    %v1317 = vmul.f32 %v985, %v1273
    %v1318 = vmul.f32 %v987, %v1275
    %v1319 = vmul.f32 %v989, %v1277
    %v1320 = vmul.f32 %v991, %v1279
    %v1321 = vmul.f32 %v993, %v1281
    %v1322 = vmul.f32 %v995, %v1283
    %v1323 = vmul.f32 %v997, %v1285
    %v1324 = vmul.f32 %v999, %v1287
    %v1325 = vmul.f32 %v1001, %v1289
    %v1326 = vmul.f32 %v1003, %v1291
    %v1327 = vmul.f32 %v1005, %v1293
    %v1328 = vmul.f32 %v1007, %v1295
    %v1329 = vmul.f32 %v1009, %v1297
    %v1330 = vadd.f32 %v1250, %v1314
    %v1331 = vadd.f32 %v1251, %v1315
    %v1332 = vadd.f32 %v1252, %v1316
    %v1333 = vadd.f32 %v1253, %v1317
    %v1334 = vadd.f32 %v1254, %v1318
    %v1335 = vadd.f32 %v1255, %v1319
    %v1336 = vadd.f32 %v1256, %v1320
    %v1337 = vadd.f32 %v1257, %v1321
    %v1338 = vadd.f32 %v1258, %v1322
    %v1339 = vadd.f32 %v1259, %v1323
    %v1340 = vadd.f32 %v1260, %v1324
    %v1341 = vadd.f32 %v1261, %v1325
    %v1342 = vadd.f32 %v1262, %v1326
    %v1343 = vadd.f32 %v1263, %v1327
    %v1344 = vadd.f32 %v1264, %v1328
    %v1345 = vadd.f32 %v1265, %v1329
    %v1346 = vld [vmem:[%s7] sm:$0x1]
    %v1348 = vlaneseq
    %v1349 = vshrl.u32 %v1348, 7
    %v1350 = vsub.s32 0, %v1349
    %v1351 = vrot.slane %v1346, %v1350
    %1352 = vrot.lane.b32.xlu0 %v1351, 32
    %v1353 = vpop.permute.xlu0 %1352
    %v1355 = vmul.f32 %v1330, %v1353
    %v1356 = vmul.f32 %v1331, %v1353
    %v1357 = vmul.f32 %v1332, %v1353
    %v1358 = vmul.f32 %v1333, %v1353
    %v1359 = vmul.f32 %v1334, %v1353
    %v1360 = vmul.f32 %v1335, %v1353
    %v1361 = vmul.f32 %v1336, %v1353
    %v1362 = vmul.f32 %v1337, %v1353
    %v1363 = vmul.f32 %v1338, %v1353
    %v1364 = vmul.f32 %v1339, %v1353
    %v1365 = vmul.f32 %v1340, %v1353
    %v1366 = vmul.f32 %v1341, %v1353
    %v1367 = vmul.f32 %v1342, %v1353
    %v1368 = vmul.f32 %v1343, %v1353
    %v1369 = vmul.f32 %v1344, %v1353
    %v1370 = vmul.f32 %v1345, %v1353
    %v1371 = vld [vmem:[%s8] sm:$0x1]
    %v1373 = vlaneseq
    %v1374 = vshrl.u32 %v1373, 7
    %v1375 = vsub.s32 0, %v1374
    %v1376 = vrot.slane %v1371, %v1375
    %1377 = vrot.lane.b32.xlu0 %v1376, 32
    %v1378 = vpop.permute.xlu0 %1377
    %v1380 = vadd.f32 %v1355, %v1378
    %v1381 = vadd.f32 %v1356, %v1378
    %v1382 = vadd.f32 %v1357, %v1378
    %v1383 = vadd.f32 %v1358, %v1378
    %v1384 = vadd.f32 %v1359, %v1378
    %v1385 = vadd.f32 %v1360, %v1378
    %v1386 = vadd.f32 %v1361, %v1378
    %v1387 = vadd.f32 %v1362, %v1378
    %v1388 = vadd.f32 %v1363, %v1378
    %v1389 = vadd.f32 %v1364, %v1378
    %v1390 = vadd.f32 %v1365, %v1378
    %v1391 = vadd.f32 %v1366, %v1378
    %v1392 = vadd.f32 %v1367, %v1378
    %v1393 = vadd.f32 %v1368, %v1378
    %v1394 = vadd.f32 %v1369, %v1378
    %v1395 = vadd.f32 %v1370, %v1378
    %1412 = vrot.lane.b32.xlu0 %v1380, 96
    %v1413 = vpop.permute.xlu0 %1412
    %1414 = vrot.lane.b32.xlu0 %v1381, 96
    %v1415 = vpop.permute.xlu0 %1414
    %1416 = vrot.lane.b32.xlu0 %v1382, 96
    %v1417 = vpop.permute.xlu0 %1416
    %1418 = vrot.lane.b32.xlu0 %v1383, 96
    %v1419 = vpop.permute.xlu0 %1418
    %1420 = vrot.lane.b32.xlu0 %v1384, 96
    %v1421 = vpop.permute.xlu0 %1420
    %1422 = vrot.lane.b32.xlu0 %v1385, 96
    %v1423 = vpop.permute.xlu0 %1422
    %1424 = vrot.lane.b32.xlu0 %v1386, 96
    %v1425 = vpop.permute.xlu0 %1424
    %1426 = vrot.lane.b32.xlu0 %v1387, 96
    %v1427 = vpop.permute.xlu0 %1426
    %1428 = vrot.lane.b32.xlu0 %v1388, 96
    %v1429 = vpop.permute.xlu0 %1428
    %1430 = vrot.lane.b32.xlu0 %v1389, 96
    %v1431 = vpop.permute.xlu0 %1430
    %1432 = vrot.lane.b32.xlu0 %v1390, 96
    %v1433 = vpop.permute.xlu0 %1432
    %1434 = vrot.lane.b32.xlu0 %v1391, 96
    %v1435 = vpop.permute.xlu0 %1434
    %1436 = vrot.lane.b32.xlu0 %v1392, 96
    %v1437 = vpop.permute.xlu0 %1436
    %1438 = vrot.lane.b32.xlu0 %v1393, 96
    %v1439 = vpop.permute.xlu0 %1438
    %1440 = vrot.lane.b32.xlu0 %v1394, 96
    %v1441 = vpop.permute.xlu0 %1440
    %1442 = vrot.lane.b32.xlu0 %v1395, 96
    %v1443 = vpop.permute.xlu0 %1442
    %1460 = vst.msk [vmem:[%s9] sm:$0xff] %vm420, %v1413
    %1461 = vst.msk [vmem:[%s9 + $0x8] sm:$0xff] %vm420, %v1415
    %1462 = vst.msk [vmem:[%s9 + $0x10] sm:$0xff] %vm420, %v1417
    %1463 = vst.msk [vmem:[%s9 + $0x18] sm:$0xff] %vm420, %v1419
    %1464 = vst.msk [vmem:[%s9 + $0x20] sm:$0xff] %vm420, %v1421
    %1465 = vst.msk [vmem:[%s9 + $0x28] sm:$0xff] %vm420, %v1423
    %1466 = vst.msk [vmem:[%s9 + $0x30] sm:$0xff] %vm420, %v1425
    %1467 = vst.msk [vmem:[%s9 + $0x38] sm:$0xff] %vm420, %v1427
    %1468 = vst.msk [vmem:[%s9 + $0x40] sm:$0xff] %vm420, %v1429
    %1469 = vst.msk [vmem:[%s9 + $0x48] sm:$0xff] %vm420, %v1431
    %1470 = vst.msk [vmem:[%s9 + $0x50] sm:$0xff] %vm420, %v1433
    %1471 = vst.msk [vmem:[%s9 + $0x58] sm:$0xff] %vm420, %v1435
    %1472 = vst.msk [vmem:[%s9 + $0x60] sm:$0xff] %vm420, %v1437
    %1473 = vst.msk [vmem:[%s9 + $0x68] sm:$0xff] %vm420, %v1439
    %1474 = vst.msk [vmem:[%s9 + $0x70] sm:$0xff] %vm420, %v1441
    %1475 = vst.msk [vmem:[%s9 + $0x78] sm:$0xff] %vm420, %v1443
    // Predicated region
    $region42: #{tpu_custom_call.1} parent=1 // pred_check
      _
    $region43: #{tpu_custom_call.1} parent=1 // pred_check_branch
      %1477 = sbr.rel (0) target = $region45
    $region44: #{tpu_custom_call.1} parent=1 // pred_region
      _
    $region45: #{tpu_custom_call.1} parent=1 // pred_fallthru
      _
    // Predicated region
    $region46: #{tpu_custom_call.1} parent=1 // pred_check
      _
    $region47: #{tpu_custom_call.1} parent=1 // pred_check_branch
      %1479 = sbr.rel (0) target = $region49
    $region48: #{tpu_custom_call.1} parent=1 // pred_region
      _
    $region49: #{tpu_custom_call.1} parent=1 // pred_fallthru
      _
    %1480 = vsyncpa [#allocation3], 1

</llo_original>
